<compile_context>
chip_gen: v5e
topology: v5e:2x2
jax: 0.10.0
libtpu: 0.0.40
codegen_flags: <defaults>
</compile_context>

<pallas_src>
import functools

import jax
import jax.numpy as jnp
from jax.experimental import pallas as pl
from jax.experimental.pallas import tpu as pltpu


def _round_up(x, m):
    return ((x + m - 1) // m) * m


def _cdiv(a, b):
    return -(-a // b)


# Lane offsets of the segments inside the packed f32 bias/fc5 row.
# Every segment starts on a 128-lane boundary so in-kernel slices stay aligned.
_B1_OFF, _B2_OFF, _B3_OFF, _B4_OFF, _W5_OFF, _B5_OFF = 0, 128, 384, 512, 640, 768
_BIAS_PACK_WIDTH = 896  # multiple of 128


def _qcritic_kernel(state_ref, act_ref, wa_ref, wb_ref, bias_ref, out_ref,
                    *, sd, ad, sd_pad, ad_pad):
    """One batch tile of the fused MLP.  Packed weights are VMEM-resident
    (bf16); accumulation / biases / ReLU / fc5 are f32."""
    cdt = wa_ref.dtype  # MXU operand dtype (bf16)

    # Static slices of the packed blobs (segment starts are sublane/lane aligned).
    w1s = wa_ref[0:sd, :]                                       # (sd, 128)
    w1a = wa_ref[sd_pad:sd_pad + ad, :]                         # (ad, 128)
    w3 = wa_ref[sd_pad + ad_pad:sd_pad + ad_pad + 256, :]       # (256, 128)
    w2 = wb_ref[:, 0:256]                                       # (128, 256)
    w4 = wb_ref[:, 256:320]                                     # (128, 64)
    b1 = bias_ref[:, _B1_OFF:_B1_OFF + 128]
    b2 = bias_ref[:, _B2_OFF:_B2_OFF + 256]
    b3 = bias_ref[:, _B3_OFF:_B3_OFF + 128]
    b4 = bias_ref[:, _B4_OFF:_B4_OFF + 64]
    w5 = bias_ref[:, _W5_OFF:_W5_OFF + 64]
    b5 = bias_ref[:, _B5_OFF:_B5_OFF + 1]

    s = state_ref[...].astype(cdt)
    a = act_ref[...].astype(cdt)

    # fc1: concat([state, actions]) @ W1  ==  state @ W1_s + actions @ W1_a
    h = (jnp.dot(s, w1s, preferred_element_type=jnp.float32)
         + jnp.dot(a, w1a, preferred_element_type=jnp.float32)
         + b1)
    h = jnp.maximum(h, 0.0)

    # fc2 / fc3 / fc4
    h = jnp.dot(h.astype(cdt), w2, preferred_element_type=jnp.float32) + b2
    h = jnp.maximum(h, 0.0)
    h = jnp.dot(h.astype(cdt), w3, preferred_element_type=jnp.float32) + b3
    h = jnp.maximum(h, 0.0)
    h = jnp.dot(h.astype(cdt), w4, preferred_element_type=jnp.float32) + b4
    h = jnp.maximum(h, 0.0)

    # fc5 (64 -> 1): VPU multiply + lane reduction, all f32.
    q = jnp.sum(h * w5, axis=-1, keepdims=True) + b5
    out_ref[...] = q.astype(out_ref.dtype)


def init_params(key, state_dim, act_dim):
    """PyTorch nn.Linear-like uniform(-1/sqrt(fan_in)) init, f32, (in, out) layout."""
    dims = [state_dim + act_dim, 128, 256, 128, 64, 1]
    params = []
    for i in range(5):
        key, kw, kb = jax.random.split(key, 3)
        fan_in, fan_out = dims[i], dims[i + 1]
        bound = 1.0 / jnp.sqrt(jnp.float32(fan_in))
        w = jax.random.uniform(kw, (fan_in, fan_out), jnp.float32, -bound, bound)
        b = jax.random.uniform(kb, (1, fan_out), jnp.float32, -bound, bound)
        params.append((w, b))
    return params


def prepare_params(params, state_dim, compute_dtype=jnp.bfloat16):
    """One-time prep: pack the 13 weight/bias tensors into 3 arrays.

    - wa: bf16 blob of the N=128 matmul weights {W1_state, W1_act, W3},
          concatenated along the contraction axis with 8-row-aligned segments.
    - wb: bf16 blob of the K=128 matmul weights {W2, W4}, concatenated along
          the output axis with 128-lane-aligned segments.
    - bias_pack: f32 row holding b1..b4, the fc5 weight row and fc5 bias,
          each segment 128-lane aligned.
    This splits W1 by input source (avoids a wrapper-side concat
    materialization -- HBM traffic itself is unchanged) and cuts the kernel
    prologue from 13 weight DMAs down to 3.
    """
    (w1, b1), (w2, b2), (w3, b3), (w4, b4), (w5, b5) = params
    sd = state_dim
    ad = w1.shape[0] - sd
    sd_pad = _round_up(sd, 8)
    ad_pad = _round_up(ad, 8)

    wa = jnp.zeros((sd_pad + ad_pad + 256, 128), compute_dtype)
    wa = wa.at[0:sd].set(w1[:sd].astype(compute_dtype))
    wa = wa.at[sd_pad:sd_pad + ad].set(w1[sd:].astype(compute_dtype))
    wa = wa.at[sd_pad + ad_pad:].set(w3.astype(compute_dtype))

    wb = jnp.zeros((128, 320), compute_dtype)
    wb = wb.at[:, 0:256].set(w2.astype(compute_dtype))
    wb = wb.at[:, 256:320].set(w4.astype(compute_dtype))

    bias = jnp.zeros((1, _BIAS_PACK_WIDTH), jnp.float32)
    bias = bias.at[:, _B1_OFF:_B1_OFF + 128].set(b1.reshape(1, -1).astype(jnp.float32))
    bias = bias.at[:, _B2_OFF:_B2_OFF + 256].set(b2.reshape(1, -1).astype(jnp.float32))
    bias = bias.at[:, _B3_OFF:_B3_OFF + 128].set(b3.reshape(1, -1).astype(jnp.float32))
    bias = bias.at[:, _B4_OFF:_B4_OFF + 64].set(b4.reshape(1, -1).astype(jnp.float32))
    bias = bias.at[:, _W5_OFF:_W5_OFF + 64].set(w5.reshape(1, -1).astype(jnp.float32))
    bias = bias.at[:, _B5_OFF:_B5_OFF + 1].set(b5.reshape(1, 1).astype(jnp.float32))
    return (wa, wb, bias)


def qcritic_forward(actions, state, prepared, *, tile_b=None):
    """actions: (bs, n_agents * n_actions), state: (bs, state_dim), any float dtype.
    `prepared` comes from prepare_params().  Returns q of shape (bs, 1, 1)."""
    wa, wb, bias = prepared
    bs, sd = state.shape
    ad = actions.shape[1]
    sd_pad, ad_pad = _round_up(sd, 8), _round_up(ad, 8)
    assert wa.shape == (sd_pad + ad_pad + 256, 128), \
        "prepared params do not match state/actions feature dims"
    assert wb.shape == (128, 320) and bias.shape == (1, _BIAS_PACK_WIDTH)

    # Tile choice: per-step overhead dominates compute, so go big.  Keep >= 2
    # tiles once the batch is non-trivial so v7x's two TensorCores both get
    # work; cap at 2048 rows/tile (VMEM, see vmem_limit_bytes below).
    if tile_b is None:
        if bs <= 256:
            tile_b = _round_up(bs, 8)
        else:
            tile_b = min(2048, _round_up(_cdiv(bs, 2), 256))
    num_tiles = _cdiv(bs, tile_b)

    kernel = functools.partial(_qcritic_kernel,
                               sd=sd, ad=ad, sd_pad=sd_pad, ad_pad=ad_pad)

    in_specs = [
        pl.BlockSpec((tile_b, sd), lambda i: (i, 0)),    # state tile
        pl.BlockSpec((tile_b, ad), lambda i: (i, 0)),    # actions tile
        # Whole packed weight/bias arrays, constant block index -> VMEM resident,
        # DMA'd only on the first grid step.
        pl.BlockSpec(wa.shape, lambda i: (0, 0)),
        pl.BlockSpec(wb.shape, lambda i: (0, 0)),
        pl.BlockSpec(bias.shape, lambda i: (0, 0)),
    ]

    q = pl.pallas_call(
        kernel,
        out_shape=jax.ShapeDtypeStruct((bs, 1), jnp.float32),
        grid_spec=pl.GridSpec(
            grid=(num_tiles,),
            in_specs=in_specs,
            out_specs=pl.BlockSpec((tile_b, 1), lambda i: (i, 0)),
        ),
        compiler_params=pltpu.CompilerParams(
            dimension_semantics=("parallel",),
            # ~13 MiB needed at tile_b=2048 (f32 intermediates + double-buffered
            # inputs + weights).  48 MiB > v5e's 16 MiB default scoped limit and
            # leaves headroom under v7x's 64 MiB physical VMEM.
            vmem_limit_bytes=48 * 1024 * 1024,
        ),
    )(state, actions, wa, wb, bias)

    return q.reshape(bs, -1, 1)


def reference_forward(actions, state, params, compute_dtype=jnp.float32):
    """Pure-JAX reference.  compute_dtype mirrors the kernel's MXU operand dtype."""
    x_s = state.astype(jnp.float32)
    x_a = actions.astype(jnp.float32)
    (w1, b1), (w2, b2), (w3, b3), (w4, b4), (w5, b5) = params
    sd = x_s.shape[1]

    def dot(a, w):
        return jnp.dot(a.astype(compute_dtype), w.astype(compute_dtype),
                       preferred_element_type=jnp.float32)

    h = jnp.maximum(dot(x_s, w1[:sd]) + dot(x_a, w1[sd:]) + b1, 0.0)
    h = jnp.maximum(dot(h, w2) + b2, 0.0)
    h = jnp.maximum(dot(h, w3) + b3, 0.0)
    h = jnp.maximum(dot(h, w4) + b4, 0.0)
    q = jnp.sum(h * w5.reshape(1, -1), axis=-1, keepdims=True) + b5.reshape(1, 1)
    return q.reshape(x_s.shape[0], -1, 1)


if __name__ == "__main__":
    # Small deterministic configuration consistent with the module:
    #   state_shape = (16,) -> state_dim = 16; n_agents = 4, n_actions = 4.
    bs = 8
    state_dim = 16
    n_agents = 4
    n_actions = 4
    act_dim = n_agents * n_actions

    key = jax.random.PRNGKey(0)
    k_state, k_act, k_params, k_state2, k_act2 = jax.random.split(key, 5)

    state = jax.random.normal(k_state, (bs, state_dim), jnp.float32)
    actions = jax.random.normal(k_act, (bs, act_dim), jnp.float32)

    params = init_params(k_params, state_dim, act_dim)
    prepared = prepare_params(params, state_dim, compute_dtype=jnp.bfloat16)

    fwd = jax.jit(qcritic_forward)

    # --- small batch (single exact tile) ---
    q = jax.block_until_ready(fwd(actions, state, prepared))
    assert q.shape == (bs, 1, 1), q.shape
    q_ref_bf16 = reference_forward(actions, state, params, compute_dtype=jnp.bfloat16)
    q_ref_f32 = reference_forward(actions, state, params)
    assert jnp.allclose(q, q_ref_bf16, atol=2e-3, rtol=2e-3), "mismatch vs bf16-precision reference"
    assert jnp.allclose(q, q_ref_f32, atol=5e-2, rtol=5e-2), "mismatch vs f32 reference"

    # --- larger ragged batch with bf16 inputs: exercises >=2 parallel tiles,
    #     the masked partial last block (no wrapper pad/slice), and the
    #     no-upcast input path ---
    bs2 = 1000
    state2 = jax.random.normal(k_state2, (bs2, state_dim), jnp.float32)
    actions2 = jax.random.normal(k_act2, (bs2, act_dim), jnp.float32)
    q2 = jax.block_until_ready(
        fwd(actions2.astype(jnp.bfloat16), state2.astype(jnp.bfloat16), prepared))
    assert q2.shape == (bs2, 1, 1), q2.shape
    q2_ref = reference_forward(actions2, state2, params, compute_dtype=jnp.bfloat16)
    assert jnp.allclose(q2, q2_ref, atol=2e-3, rtol=2e-3), "mismatch vs reference (tiled ragged batch)"

    print("KERNEL_OK")
</pallas_src>

<mosaic_0001>
module attributes {stable_mosaic.version = 11 : i64} {
  func.func @_qcritic_kernel(%arg0: i32, %arg1: memref<8x16xf32, #tpu.memory_space<vmem>>, %arg2: memref<8x16xf32, #tpu.memory_space<vmem>>, %arg3: memref<288x128xbf16, #tpu.memory_space<vmem>>, %arg4: memref<128x320xbf16, #tpu.memory_space<vmem>>, %arg5: memref<1x896xf32, #tpu.memory_space<vmem>>, %arg6: memref<8x1xf32, #tpu.memory_space<vmem>>) attributes {dimension_semantics = [#tpu.dimension_semantics<parallel>], iteration_bounds = array<i64: 1>, scalar_prefetch = 0 : i64, scratch_operands = 0 : i64, tpu.core_type = #tpu.core_type<tc>, window_params = [{transform_indices = @transform_0, window_bounds = array<i64: 8, 16>}, {transform_indices = @transform_1, window_bounds = array<i64: 8, 16>}, {pipeline_mode = #tpu.pipeline_mode<synchronous>, transform_indices = @transform_2, window_bounds = array<i64: 288, 128>}, {pipeline_mode = #tpu.pipeline_mode<synchronous>, transform_indices = @transform_3, window_bounds = array<i64: 128, 320>}, {pipeline_mode = #tpu.pipeline_mode<synchronous>, transform_indices = @transform_4, window_bounds = array<i64: 1, 896>}, {transform_indices = @transform_5, window_bounds = array<i64: 8, 1>}]} {
    %c0 = arith.constant 0 : index
    %c0_0 = arith.constant 0 : index
    %0 = vector.load %arg3[%c0, %c0_0] : memref<288x128xbf16, #tpu.memory_space<vmem>>, vector<16x128xbf16>
    %c16 = arith.constant 16 : index
    %c0_1 = arith.constant 0 : index
    %1 = vector.load %arg3[%c16, %c0_1] : memref<288x128xbf16, #tpu.memory_space<vmem>>, vector<16x128xbf16>
    %c32 = arith.constant 32 : index
    %c0_2 = arith.constant 0 : index
    %2 = vector.load %arg3[%c32, %c0_2] : memref<288x128xbf16, #tpu.memory_space<vmem>>, vector<256x128xbf16>
    %c0_3 = arith.constant 0 : index
    %c0_4 = arith.constant 0 : index
    %3 = vector.load %arg4[%c0_3, %c0_4] : memref<128x320xbf16, #tpu.memory_space<vmem>>, vector<128x256xbf16>
    %c0_5 = arith.constant 0 : index
    %c256 = arith.constant 256 : index
    %4 = vector.load %arg4[%c0_5, %c256] : memref<128x320xbf16, #tpu.memory_space<vmem>>, vector<128x64xbf16>
    %c0_6 = arith.constant 0 : index
    %c0_7 = arith.constant 0 : index
    %5 = vector.load %arg5[%c0_6, %c0_7] : memref<1x896xf32, #tpu.memory_space<vmem>>, vector<1x128xf32>
    %c0_8 = arith.constant 0 : index
    %c128 = arith.constant 128 : index
    %6 = vector.load %arg5[%c0_8, %c128] : memref<1x896xf32, #tpu.memory_space<vmem>>, vector<1x256xf32>
    %c0_9 = arith.constant 0 : index
    %c384 = arith.constant 384 : index
    %7 = vector.load %arg5[%c0_9, %c384] : memref<1x896xf32, #tpu.memory_space<vmem>>, vector<1x128xf32>
    %c0_10 = arith.constant 0 : index
    %c512 = arith.constant 512 : index
    %8 = vector.load %arg5[%c0_10, %c512] : memref<1x896xf32, #tpu.memory_space<vmem>>, vector<1x64xf32>
    %c0_11 = arith.constant 0 : index
    %c640 = arith.constant 640 : index
    %9 = vector.load %arg5[%c0_11, %c640] : memref<1x896xf32, #tpu.memory_space<vmem>>, vector<1x64xf32>
    %c0_12 = arith.constant 0 : index
    %c768 = arith.constant 768 : index
    %10 = vector.load %arg5[%c0_12, %c768] : memref<1x896xf32, #tpu.memory_space<vmem>>, vector<1x1xf32>
    %c0_13 = arith.constant 0 : index
    %c0_14 = arith.constant 0 : index
    %11 = vector.load %arg1[%c0_13, %c0_14] : memref<8x16xf32, #tpu.memory_space<vmem>>, vector<8x16xf32>
    %12 = arith.truncf %11 : vector<8x16xf32> to vector<8x16xbf16>
    %c0_15 = arith.constant 0 : index
    %c0_16 = arith.constant 0 : index
    %13 = vector.load %arg2[%c0_15, %c0_16] : memref<8x16xf32, #tpu.memory_space<vmem>>, vector<8x16xf32>
    %14 = arith.truncf %13 : vector<8x16xf32> to vector<8x16xbf16>
    %cst = arith.constant dense<0.000000e+00> : vector<8x128xf32>
    %15 = tpu.matmul %12, %0, %cst {dimension_numbers = #tpu.dot_dimension_numbers<[1], [0], [0], [1], [0, 0, 1, 1], [], []>} : vector<8x16xbf16>, vector<16x128xbf16>, vector<8x128xf32> -> vector<8x128xf32>
    %cst_17 = arith.constant dense<0.000000e+00> : vector<8x128xf32>
    %16 = tpu.matmul %14, %1, %cst_17 {dimension_numbers = #tpu.dot_dimension_numbers<[1], [0], [0], [1], [0, 0, 1, 1], [], []>} : vector<8x16xbf16>, vector<16x128xbf16>, vector<8x128xf32> -> vector<8x128xf32>
    %17 = arith.addf %15, %16 : vector<8x128xf32>
    %18 = vector.broadcast %5 : vector<1x128xf32> to vector<8x128xf32>
    %19 = arith.addf %17, %18 : vector<8x128xf32>
    %cst_18 = arith.constant 0.000000e+00 : f32
    %20 = vector.broadcast %cst_18 : f32 to vector<8x128xf32>
    %21 = arith.maximumf %19, %20 : vector<8x128xf32>
    %22 = arith.truncf %21 : vector<8x128xf32> to vector<8x128xbf16>
    %cst_19 = arith.constant dense<0.000000e+00> : vector<8x256xf32>
    %23 = tpu.matmul %22, %3, %cst_19 {dimension_numbers = #tpu.dot_dimension_numbers<[1], [0], [0], [1], [0, 0, 1, 1], [], []>} : vector<8x128xbf16>, vector<128x256xbf16>, vector<8x256xf32> -> vector<8x256xf32>
    %24 = vector.broadcast %6 : vector<1x256xf32> to vector<8x256xf32>
    %25 = arith.addf %23, %24 : vector<8x256xf32>
    %cst_20 = arith.constant 0.000000e+00 : f32
    %26 = vector.broadcast %cst_20 : f32 to vector<8x256xf32>
    %27 = arith.maximumf %25, %26 : vector<8x256xf32>
    %28 = arith.truncf %27 : vector<8x256xf32> to vector<8x256xbf16>
    %cst_21 = arith.constant dense<0.000000e+00> : vector<8x128xf32>
    %29 = tpu.matmul %28, %2, %cst_21 {dimension_numbers = #tpu.dot_dimension_numbers<[1], [0], [0], [1], [0, 0, 1, 1], [], []>} : vector<8x256xbf16>, vector<256x128xbf16>, vector<8x128xf32> -> vector<8x128xf32>
    %30 = vector.broadcast %7 : vector<1x128xf32> to vector<8x128xf32>
    %31 = arith.addf %29, %30 : vector<8x128xf32>
    %cst_22 = arith.constant 0.000000e+00 : f32
    %32 = vector.broadcast %cst_22 : f32 to vector<8x128xf32>
    %33 = arith.maximumf %31, %32 : vector<8x128xf32>
    %34 = arith.truncf %33 : vector<8x128xf32> to vector<8x128xbf16>
    %cst_23 = arith.constant dense<0.000000e+00> : vector<8x64xf32>
    %35 = tpu.matmul %34, %4, %cst_23 {dimension_numbers = #tpu.dot_dimension_numbers<[1], [0], [0], [1], [0, 0, 1, 1], [], []>} : vector<8x128xbf16>, vector<128x64xbf16>, vector<8x64xf32> -> vector<8x64xf32>
    %36 = vector.broadcast %8 : vector<1x64xf32> to vector<8x64xf32>
    %37 = arith.addf %35, %36 : vector<8x64xf32>
    %cst_24 = arith.constant 0.000000e+00 : f32
    %38 = vector.broadcast %cst_24 : f32 to vector<8x64xf32>
    %39 = arith.maximumf %37, %38 : vector<8x64xf32>
    %40 = vector.broadcast %9 : vector<1x64xf32> to vector<8x64xf32>
    %41 = arith.mulf %39, %40 : vector<8x64xf32>
    %cst_25 = arith.constant dense<0.000000e+00> : vector<8xf32>
    %42 = vector.multi_reduction <add>, %41, %cst_25 [1] : vector<8x64xf32> to vector<8xf32>
    %43 = vector.shape_cast %42 : vector<8xf32> to vector<8x1xf32>
    %44 = vector.broadcast %10 : vector<1x1xf32> to vector<8x1xf32>
    %45 = arith.addf %43, %44 : vector<8x1xf32>
    %c0_26 = arith.constant 0 : index
    %c0_27 = arith.constant 0 : index
    %46 = vector.load %arg6[%c0_26, %c0_27] : memref<8x1xf32, #tpu.memory_space<vmem>>, vector<8x1xf32>
    tpu.vector_store %arg6[%c0_26, %c0_27], %45 {strides = array<i32>} : memref<8x1xf32, #tpu.memory_space<vmem>>, vector<8x1xf32>,
    return
  }
  func.func @transform_0(%arg0: i32) -> (i32, i32) {
    %c0_i32 = arith.constant 0 : i32
    %c0_i32_0 = arith.constant 0 : i32
    return %arg0, %c0_i32 : i32, i32
  }
  func.func @transform_1(%arg0: i32) -> (i32, i32) {
    %c0_i32 = arith.constant 0 : i32
    %c0_i32_0 = arith.constant 0 : i32
    return %arg0, %c0_i32 : i32, i32
  }
  func.func @transform_2(%arg0: i32) -> (i32, i32) {
    %c0_i32 = arith.constant 0 : i32
    %c0_i32_0 = arith.constant 0 : i32
    %c0_i32_1 = arith.constant 0 : i32
    return %c0_i32, %c0_i32_0 : i32, i32
  }
  func.func @transform_3(%arg0: i32) -> (i32, i32) {
    %c0_i32 = arith.constant 0 : i32
    %c0_i32_0 = arith.constant 0 : i32
    %c0_i32_1 = arith.constant 0 : i32
    return %c0_i32, %c0_i32_0 : i32, i32
  }
  func.func @transform_4(%arg0: i32) -> (i32, i32) {
    %c0_i32 = arith.constant 0 : i32
    %c0_i32_0 = arith.constant 0 : i32
    %c0_i32_1 = arith.constant 0 : i32
    return %c0_i32, %c0_i32_0 : i32, i32
  }
  func.func @transform_5(%arg0: i32) -> (i32, i32) {
    %c0_i32 = arith.constant 0 : i32
    %c0_i32_0 = arith.constant 0 : i32
    return %arg0, %c0_i32 : i32, i32
  }
}

</mosaic_0001>

<llo_original>
// kernel: qcritic_forward.1
$region0: #{qcritic_forward.1}
  #allocation0 [shape = 'u32[]', space=smem, size = 0x4, offset = 0x4, fixed_abs, tag = 'smem constant byte address 0x4 - core index']
  #allocation1 [shape = 'u32[72,128]{1,0:T(1,128)}', space=vmem, size = 0x9000, scoped, tag = 'internal scratch']
  %s0 = inlined_call_operand.vmem [shape: f32[8,16], index: 0, kind: input, shape index: {}]
  %s1 = inlined_call_operand.vmem [shape: f32[8,16], index: 1, kind: input, shape index: {}]
  %s2 = inlined_call_operand.vmem [shape: bf16[288,128], index: 2, kind: input, shape index: {}]
  %s3 = inlined_call_operand.vmem [shape: bf16[128,320], index: 3, kind: input, shape index: {}]
  %s4 = inlined_call_operand.vmem [shape: f32[1,896], index: 4, kind: input, shape index: {}]
  %s5 = inlined_call_operand.vmem [shape: f32[8,1], index: 5, kind: output, shape index: {}]
  %s6 = sld [smem:[#allocation0]]
  $region30: #{qcritic_forward.1} parent=0
    _
  %s8 = ssub.s32 1, %s6
  %s9 = scalar_select 0, %s8, %s6
  // Predicated region
  $region2: #{qcritic_forward.1} parent=0 // pred_check
    _
  $region3: #{qcritic_forward.1} parent=0 // pred_check_branch
    %11 = sbr.rel (0) target = $region5
  $region4: #{qcritic_forward.1} parent=0 // pred_region
    _
  $region5: #{qcritic_forward.1} parent=0 // pred_fallthru
    _
  // Predicated region
  $region6: #{qcritic_forward.1} parent=0 // pred_check
    _
  $region7: #{qcritic_forward.1} parent=0 // pred_check_branch
    %13 = sbr.rel (0) target = $region9
  $region8: #{qcritic_forward.1} parent=0 // pred_region
    _
  $region9: #{qcritic_forward.1} parent=0 // pred_fallthru
    _
  // Predicated region
  $region10: #{qcritic_forward.1} parent=0 // pred_check
    _
  $region11: #{qcritic_forward.1} parent=0 // pred_check_branch
    %15 = sbr.rel (0) target = $region13
  $region12: #{qcritic_forward.1} parent=0 // pred_region
    _
  $region13: #{qcritic_forward.1} parent=0 // pred_fallthru
    _
  // Predicated region
  $region14: #{qcritic_forward.1} parent=0 // pred_check
    _
  $region15: #{qcritic_forward.1} parent=0 // pred_check_branch
    %17 = sbr.rel (0) target = $region17
  $region16: #{qcritic_forward.1} parent=0 // pred_region
    _
  $region17: #{qcritic_forward.1} parent=0 // pred_fallthru
    _
  // Predicated region
  $region18: #{qcritic_forward.1} parent=0 // pred_check
    _
  $region19: #{qcritic_forward.1} parent=0 // pred_check_branch
    %19 = sbr.rel (0) target = $region21
  $region20: #{qcritic_forward.1} parent=0 // pred_region
    _
  $region21: #{qcritic_forward.1} parent=0 // pred_fallthru
    _
  %v21 = vld [vmem:[%s2] sm:$0xf]
  %v22 = vld [vmem:[%s2 + $0x4] sm:$0xf]
  %v23 = vld [vmem:[%s2 + $0x8] sm:$0xf]
  %v24 = vld [vmem:[%s2 + $0xc] sm:$0xf]
  %v25 = vld [vmem:[%s2 + $0x10] sm:$0xf]
  %v26 = vld [vmem:[%s2 + $0x14] sm:$0xf]
  %v27 = vld [vmem:[%s2 + $0x18] sm:$0xf]
  %v28 = vld [vmem:[%s2 + $0x1c] sm:$0xf]
  %v29 = vld [vmem:[%s2 + $0x20] sm:$0xf]
  %v30 = vld [vmem:[%s2 + $0x24] sm:$0xf]
  %v31 = vld [vmem:[%s2 + $0x28] sm:$0xf]
  %v32 = vld [vmem:[%s2 + $0x2c] sm:$0xf]
  %v33 = vld [vmem:[%s2 + $0x30] sm:$0xf]
  %v34 = vld [vmem:[%s2 + $0x34] sm:$0xf]
  %v35 = vld [vmem:[%s2 + $0x38] sm:$0xf]
  %v36 = vld [vmem:[%s2 + $0x3c] sm:$0xf]
  %v37 = vld [vmem:[%s2 + $0x40] sm:$0xf]
  %v38 = vld [vmem:[%s2 + $0x44] sm:$0xf]
  %v39 = vld [vmem:[%s2 + $0x48] sm:$0xf]
  %v40 = vld [vmem:[%s2 + $0x4c] sm:$0xf]
  %v41 = vld [vmem:[%s2 + $0x50] sm:$0xf]
  %v42 = vld [vmem:[%s2 + $0x54] sm:$0xf]
  %v43 = vld [vmem:[%s2 + $0x58] sm:$0xf]
  %v44 = vld [vmem:[%s2 + $0x5c] sm:$0xf]
  %v45 = vld [vmem:[%s2 + $0x60] sm:$0xf]
  %v46 = vld [vmem:[%s2 + $0x64] sm:$0xf]
  %v47 = vld [vmem:[%s2 + $0x68] sm:$0xf]
  %v48 = vld [vmem:[%s2 + $0x6c] sm:$0xf]
  %v49 = vld [vmem:[%s2 + $0x70] sm:$0xf]
  %v50 = vld [vmem:[%s2 + $0x74] sm:$0xf]
  %v51 = vld [vmem:[%s2 + $0x78] sm:$0xf]
  %v52 = vld [vmem:[%s2 + $0x7c] sm:$0xf]
  %v53 = vld [vmem:[%s2 + $0x80] sm:$0xf]
  %v54 = vld [vmem:[%s2 + $0x84] sm:$0xf]
  %v55 = vld [vmem:[%s2 + $0x88] sm:$0xf]
  %v56 = vld [vmem:[%s2 + $0x8c] sm:$0xf]
  %v57 = vld [vmem:[%s3] sm:$0xff]
  %v58 = vld [vmem:[%s3 + $0xc] sm:$0xff]
  %v59 = vld [vmem:[%s3 + $0x18] sm:$0xff]
  %v60 = vld [vmem:[%s3 + $0x24] sm:$0xff]
  %v61 = vld [vmem:[%s3 + $0x30] sm:$0xff]
  %v62 = vld [vmem:[%s3 + $0x3c] sm:$0xff]
  %v63 = vld [vmem:[%s3 + $0x48] sm:$0xff]
  %v64 = vld [vmem:[%s3 + $0x54] sm:$0xff]
  %v65 = vld [vmem:[%s3 + $0x60] sm:$0xff]
  %v66 = vld [vmem:[%s3 + $0x6c] sm:$0xff]
  %v67 = vld [vmem:[%s3 + $0x78] sm:$0xff]
  %v68 = vld [vmem:[%s3 + $0x84] sm:$0xff]
  %v69 = vld [vmem:[%s3 + $0x90] sm:$0xff]
  %v70 = vld [vmem:[%s3 + $0x9c] sm:$0xff]
  %v71 = vld [vmem:[%s3 + $0xa8] sm:$0xff]
  %v72 = vld [vmem:[%s3 + $0xb4] sm:$0xff]
  %v73 = vld [vmem:[%s3 + $0x8] sm:$0xf]
  %v74 = vld [vmem:[%s3 + $0x14] sm:$0xf]
  %v75 = vld [vmem:[%s3 + $0x20] sm:$0xf]
  %v76 = vld [vmem:[%s3 + $0x2c] sm:$0xf]
  %v77 = vld [vmem:[%s3 + $0x38] sm:$0xf]
  %v78 = vld [vmem:[%s3 + $0x44] sm:$0xf]
  %v79 = vld [vmem:[%s3 + $0x50] sm:$0xf]
  %v80 = vld [vmem:[%s3 + $0x5c] sm:$0xf]
  %v81 = vld [vmem:[%s3 + $0x68] sm:$0xf]
  %v82 = vld [vmem:[%s3 + $0x74] sm:$0xf]
  %v83 = vld [vmem:[%s3 + $0x80] sm:$0xf]
  %v84 = vld [vmem:[%s3 + $0x8c] sm:$0xf]
  %v85 = vld [vmem:[%s3 + $0x98] sm:$0xf]
  %v86 = vld [vmem:[%s3 + $0xa4] sm:$0xf]
  %v87 = vld [vmem:[%s3 + $0xb0] sm:$0xf]
  %v88 = vld [vmem:[%s3 + $0xbc] sm:$0xf]
  %v89 = vld [vmem:[%s4] sm:$0x1]
  %v90 = vld [vmem:[%s4 + $0x1] sm:$0x3]
  %v91 = vld [vmem:[%s4 + $0x3] sm:$0x1]
  %v92 = vld [vmem:[%s4 + $0x4] sm:$0x1]
  %v93 = vld [vmem:[%s4 + $0x5] sm:$0x1]
  %v94 = vld [vmem:[%s4 + $0x6] sm:$0x1]
  %v95 = vld [vmem:[%s0] sm:$0xff]
  %v96 = vpack.c.bf16 %v95, %v95
  %v97 = vld [vmem:[%s1] sm:$0xff]
  %v98 = vpack.c.bf16 %v97, %v97
  %v101 = vunpack.c.l.b16 %v23
  %v102 = vunpack.c.l.b16 %v24
  %v103 = vpack.c.b16 %v102, %v101
  %vm105 = vcmask 130048
  %v107 = vsel %vm105, %v98, 0
  %109 = vmatpush.bf16.msra.mxu0 0
  %110 = vmatpush.bf16.msra.mxu0 0
  %111 = vmatpush.bf16.msra.mxu0 0
  %112 = vmatpush.bf16.msra.mxu0 0
  %113 = vmatpush.bf16.msra.mxu0 0
  %114 = vmatpush.bf16.msra.mxu0 0
  %115 = vmatpush.bf16.msra.mxu0 0
  %116 = vmatpush.bf16.msra.mxu0 %v103
  %117 = vmatmul.bf16.gmra.mxu0 %v107
  %v118 = vpop.f32.mrf.mxu0
  %v119 = vadd.f32 0.0, %v118
  %v120 = vpop.f32.mrf.mxu0
  %121 = vdwg.mxu0
  %v124 = vunpack.c.l.b16 %v21
  %v125 = vunpack.c.l.b16 %v22
  %v126 = vpack.c.b16 %v125, %v124
  %v129 = vsel %vm105, %v96, 0
  %131 = vmatpush.bf16.msra.mxu0 0
  %132 = vmatpush.bf16.msra.mxu0 0
  %133 = vmatpush.bf16.msra.mxu0 0
  %134 = vmatpush.bf16.msra.mxu0 0
  %135 = vmatpush.bf16.msra.mxu0 0
  %136 = vmatpush.bf16.msra.mxu0 0
  %137 = vmatpush.bf16.msra.mxu0 0
  %138 = vmatpush.bf16.msra.mxu0 %v126
  %139 = vmatmul.bf16.gmra.mxu0 %v129
  %v140 = vpop.f32.mrf.mxu0
  %v141 = vadd.f32 %v119, %v140
  %v142 = vpop.f32.mrf.mxu0
  %143 = vdwg.mxu0
  %v145 = vperm.slane %v89, 0
  %v147 = vadd.f32 %v141, %v145
  %v148 = vmax.f32 %v147, 0.0
  %v149 = vpack.c.bf16 %v148, %v148
  %v151 = vperm.slane %v90, 0
  %v152 = vperm.slane %v90, 1
  %v171 = vunpack.c.l.b16 %v57
  %v172 = vunpack.c.h.b16 %v57
  %v173 = vunpack.c.l.b16 %v58
  %v174 = vunpack.c.h.b16 %v58
  %v175 = vunpack.c.l.b16 %v59
  %v176 = vunpack.c.h.b16 %v59
  %v177 = vunpack.c.l.b16 %v60
  %v178 = vunpack.c.h.b16 %v60
  %v179 = vunpack.c.l.b16 %v61
  %v180 = vunpack.c.h.b16 %v61
  %v181 = vunpack.c.l.b16 %v62
  %v182 = vunpack.c.h.b16 %v62
  %v183 = vunpack.c.l.b16 %v63
  %v184 = vunpack.c.h.b16 %v63
  %v185 = vunpack.c.l.b16 %v64
  %v186 = vunpack.c.h.b16 %v64
  %v187 = vunpack.c.l.b16 %v65
  %v188 = vunpack.c.h.b16 %v65
  %v189 = vunpack.c.l.b16 %v66
  %v190 = vunpack.c.h.b16 %v66
  %v191 = vunpack.c.l.b16 %v67
  %v192 = vunpack.c.h.b16 %v67
  %v193 = vunpack.c.l.b16 %v68
  %v194 = vunpack.c.h.b16 %v68
  %v195 = vunpack.c.l.b16 %v69
  %v196 = vunpack.c.h.b16 %v69
  %v197 = vunpack.c.l.b16 %v70
  %v198 = vunpack.c.h.b16 %v70
  %v199 = vunpack.c.l.b16 %v71
  %v200 = vunpack.c.h.b16 %v71
  %v201 = vunpack.c.l.b16 %v72
  %v202 = vunpack.c.h.b16 %v72
  %v203 = vpack.c.b16 %v173, %v171
  %v204 = vpack.c.b16 %v174, %v172
  %v205 = vpack.c.b16 %v177, %v175
  %v206 = vpack.c.b16 %v178, %v176
  %v207 = vpack.c.b16 %v181, %v179
  %v208 = vpack.c.b16 %v182, %v180
  %v209 = vpack.c.b16 %v185, %v183
  %v210 = vpack.c.b16 %v186, %v184
  %v211 = vpack.c.b16 %v189, %v187
  %v212 = vpack.c.b16 %v190, %v188
  %v213 = vpack.c.b16 %v193, %v191
  %v214 = vpack.c.b16 %v194, %v192
  %v215 = vpack.c.b16 %v197, %v195
  %v216 = vpack.c.b16 %v198, %v196
  %v217 = vpack.c.b16 %v201, %v199
  %v218 = vpack.c.b16 %v202, %v200
  %235 = vmatpush.bf16.msra.mxu0 %v217
  %236 = vmatpush.bf16.msra.mxu0 %v215
  %237 = vmatpush.bf16.msra.mxu0 %v213
  %238 = vmatpush.bf16.msra.mxu0 %v211
  %239 = vmatpush.bf16.msra.mxu0 %v209
  %240 = vmatpush.bf16.msra.mxu0 %v207
  %241 = vmatpush.bf16.msra.mxu0 %v205
  %242 = vmatpush.bf16.msra.mxu0 %v203
  %243 = vmatmul.bf16.gmra.mxu0 %v149
  %v244 = vpop.f32.mrf.mxu0
  %v245 = vadd.f32 %v151, %v244
  %v246 = vpop.f32.mrf.mxu0
  %247 = vdwg.mxu0
  %248 = vmatpush.bf16.msra.mxu0 %v218
  %249 = vmatpush.bf16.msra.mxu0 %v216
  %250 = vmatpush.bf16.msra.mxu0 %v214
  %251 = vmatpush.bf16.msra.mxu0 %v212
  %252 = vmatpush.bf16.msra.mxu0 %v210
  %253 = vmatpush.bf16.msra.mxu0 %v208
  %254 = vmatpush.bf16.msra.mxu0 %v206
  %255 = vmatpush.bf16.msra.mxu0 %v204
  %256 = vmatmul.bf16.gmra.mxu0 %v149
  %v257 = vpop.f32.mrf.mxu0
  %v258 = vadd.f32 %v152, %v257
  %v259 = vpop.f32.mrf.mxu0
  %260 = vdwg.mxu0
  %v261 = vmax.f32 %v245, 0.0
  %v262 = vmax.f32 %v258, 0.0
  %v263 = vpack.c.bf16 %v261, %v261
  %v264 = vpack.c.bf16 %v262, %v262
  %v266 = vperm.slane %v91, 0
  %v300 = vunpack.c.l.b16 %v25
  %v301 = vunpack.c.l.b16 %v26
  %v302 = vunpack.c.l.b16 %v27
  %v303 = vunpack.c.l.b16 %v28
  %v304 = vunpack.c.l.b16 %v29
  %v305 = vunpack.c.l.b16 %v30
  %v306 = vunpack.c.l.b16 %v31
  %v307 = vunpack.c.l.b16 %v32
  %v308 = vunpack.c.l.b16 %v33
  %v309 = vunpack.c.l.b16 %v34
  %v310 = vunpack.c.l.b16 %v35
  %v311 = vunpack.c.l.b16 %v36
  %v312 = vunpack.c.l.b16 %v37
  %v313 = vunpack.c.l.b16 %v38
  %v314 = vunpack.c.l.b16 %v39
  %v315 = vunpack.c.l.b16 %v40
  %v316 = vunpack.c.l.b16 %v41
  %v317 = vunpack.c.l.b16 %v42
  %v318 = vunpack.c.l.b16 %v43
  %v319 = vunpack.c.l.b16 %v44
  %v320 = vunpack.c.l.b16 %v45
  %v321 = vunpack.c.l.b16 %v46
  %v322 = vunpack.c.l.b16 %v47
  %v323 = vunpack.c.l.b16 %v48
  %v324 = vunpack.c.l.b16 %v49
  %v325 = vunpack.c.l.b16 %v50
  %v326 = vunpack.c.l.b16 %v51
  %v327 = vunpack.c.l.b16 %v52
  %v328 = vunpack.c.l.b16 %v53
  %v329 = vunpack.c.l.b16 %v54
  %v330 = vunpack.c.l.b16 %v55
  %v331 = vunpack.c.l.b16 %v56
  %v332 = vpack.c.b16 %v301, %v300
  %v333 = vpack.c.b16 %v303, %v302
  %v334 = vpack.c.b16 %v305, %v304
  %v335 = vpack.c.b16 %v307, %v306
  %v336 = vpack.c.b16 %v309, %v308
  %v337 = vpack.c.b16 %v311, %v310
  %v338 = vpack.c.b16 %v313, %v312
  %v339 = vpack.c.b16 %v315, %v314
  %v340 = vpack.c.b16 %v317, %v316
  %v341 = vpack.c.b16 %v319, %v318
  %v342 = vpack.c.b16 %v321, %v320
  %v343 = vpack.c.b16 %v323, %v322
  %v344 = vpack.c.b16 %v325, %v324
  %v345 = vpack.c.b16 %v327, %v326
  %v346 = vpack.c.b16 %v329, %v328
  %v347 = vpack.c.b16 %v331, %v330
  %364 = vmatpush.bf16.msra.mxu0 %v339
  %365 = vmatpush.bf16.msra.mxu0 %v338
  %366 = vmatpush.bf16.msra.mxu0 %v337
  %367 = vmatpush.bf16.msra.mxu0 %v336
  %368 = vmatpush.bf16.msra.mxu0 %v335
  %369 = vmatpush.bf16.msra.mxu0 %v334
  %370 = vmatpush.bf16.msra.mxu0 %v333
  %371 = vmatpush.bf16.msra.mxu0 %v332
  %372 = vmatmul.bf16.gmra.mxu0 %v263
  %v373 = vpop.f32.mrf.mxu0
  %v374 = vadd.f32 %v266, %v373
  %v375 = vpop.f32.mrf.mxu0
  %376 = vdwg.mxu0
  %377 = vmatpush.bf16.msra.mxu0 %v347
  %378 = vmatpush.bf16.msra.mxu0 %v346
  %379 = vmatpush.bf16.msra.mxu0 %v345
  %380 = vmatpush.bf16.msra.mxu0 %v344
  %381 = vmatpush.bf16.msra.mxu0 %v343
  %382 = vmatpush.bf16.msra.mxu0 %v342
  %383 = vmatpush.bf16.msra.mxu0 %v341
  %384 = vmatpush.bf16.msra.mxu0 %v340
  %385 = vmatmul.bf16.gmra.mxu0 %v264
  %v386 = vpop.f32.mrf.mxu0
  %v387 = vadd.f32 %v374, %v386
  %v388 = vpop.f32.mrf.mxu0
  %389 = vdwg.mxu0
  %v390 = vmax.f32 %v387, 0.0
  %v391 = vpack.c.bf16 %v390, %v390
  %v393 = vperm.slane %v92, 0
  %v411 = vunpack.c.l.b16 %v73
  %v412 = vunpack.c.l.b16 %v74
  %v413 = vunpack.c.l.b16 %v75
  %v414 = vunpack.c.l.b16 %v76
  %v415 = vunpack.c.l.b16 %v77
  %v416 = vunpack.c.l.b16 %v78
  %v417 = vunpack.c.l.b16 %v79
  %v418 = vunpack.c.l.b16 %v80
  %v419 = vunpack.c.l.b16 %v81
  %v420 = vunpack.c.l.b16 %v82
  %v421 = vunpack.c.l.b16 %v83
  %v422 = vunpack.c.l.b16 %v84
  %v423 = vunpack.c.l.b16 %v85
  %v424 = vunpack.c.l.b16 %v86
  %v425 = vunpack.c.l.b16 %v87
  %v426 = vunpack.c.l.b16 %v88
  %v427 = vpack.c.b16 %v412, %v411
  %v428 = vpack.c.b16 %v414, %v413
  %v429 = vpack.c.b16 %v416, %v415
  %v430 = vpack.c.b16 %v418, %v417
  %v431 = vpack.c.b16 %v420, %v419
  %v432 = vpack.c.b16 %v422, %v421
  %v433 = vpack.c.b16 %v424, %v423
  %v434 = vpack.c.b16 %v426, %v425
  %443 = vmatpush.bf16.msra.mxu0 %v434
  %444 = vmatpush.bf16.msra.mxu0 %v433
  %445 = vmatpush.bf16.msra.mxu0 %v432
  %446 = vmatpush.bf16.msra.mxu0 %v431
  %447 = vmatpush.bf16.msra.mxu0 %v430
  %448 = vmatpush.bf16.msra.mxu0 %v429
  %449 = vmatpush.bf16.msra.mxu0 %v428
  %450 = vmatpush.bf16.msra.mxu0 %v427
  %451 = vmatmul.bf16.gmra.mxu0 %v391
  %v452 = vpop.f32.mrf.mxu0
  %v453 = vadd.f32 %v393, %v452
  %v454 = vpop.f32.mrf.mxu0
  %455 = vdwg.mxu0
  %v456 = vmax.f32 %v453, 0.0
  %v458 = vperm.slane %v93, 0
  %v460 = vmul.f32 %v456, %v458
  %vm461 = vcmask 523264
  %v462 = vsel %vm461, %v460, 0.0
  %463 = vadd.xlane.f32.xlu0 %v462
  %v464 = vpop.xlane.xlu0 %463
  %v466 = vperm.slane %v94, 0
  %v468 = vadd.f32 %v464, %v466
  %vm469 = vcmask 7168
  %470 = vst.msk [vmem:[%s5] sm:$0xff] %vm469, %v468
  // Predicated region
  $region22: #{qcritic_forward.1} parent=0 // pred_check
    _
  $region23: #{qcritic_forward.1} parent=0 // pred_check_branch
    %472 = sbr.rel (0) target = $region25
  $region24: #{qcritic_forward.1} parent=0 // pred_region
    _
  $region25: #{qcritic_forward.1} parent=0 // pred_fallthru
    _
  // Predicated region
  $region26: #{qcritic_forward.1} parent=0 // pred_check
    _
  $region27: #{qcritic_forward.1} parent=0 // pred_check_branch
    %474 = sbr.rel (0) target = $region29
  $region28: #{qcritic_forward.1} parent=0 // pred_region
    _
  $region29: #{qcritic_forward.1} parent=0 // pred_fallthru
    _

</llo_original>
